<compile_context>
chip_gen: v5e
topology: v5e:2x2
jax: 0.10.0
libtpu: 0.0.40
codegen_flags: <defaults>
</compile_context>

<pallas_src>
import jax
import jax.numpy as jnp
from jax.experimental import pallas as pl
from jax.experimental.pallas import tpu as pltpu


_MAX_ROW_TILE = 512  # f32 rows per grid step; keeps double-buffered tiles well inside v7x's 64 MiB VMEM.


def _row_tile(m: int) -> int:
    return m if m <= _MAX_ROW_TILE else _MAX_ROW_TILE


# ----------------------------- kernels ------------------------------------- #

def _vae_z_kernel(x_ref, noise_ref, w1m_ref, w1v_ref, b1m_ref, b1v_ref,
                  w2_ref, b2_ref, mean_ref, std_ref, out_ref):
    """Fused z path, per row tile of TM rows.

      x_ref:      (TM, d_model)      f32      noise_ref: (TM, d_latent)    f32
      w1m/w1v:    (d_model, d_latent) bf16    b1m/b1v:   (1, d_latent)     f32
      w2:         (d_latent, d_model) bf16    b2:        (1, d_model)      f32
      mean/std:   (TM, d_latent)      f32     out:       (TM, d_model)     f32
    """
    x = x_ref[...].astype(jnp.bfloat16)                       # bf16 MXU inputs
    mean = jnp.dot(x, w1m_ref[...],
                   preferred_element_type=jnp.float32) + b1m_ref[...]
    logvar = jnp.dot(x, w1v_ref[...],
                     preferred_element_type=jnp.float32) + b1v_ref[...]
    std = jnp.exp(logvar * 0.5)                               # EUP, f32
    z = mean + std * noise_ref[...]                           # f32 VPU epilogue
    # latent2model applied to the z rows while z is still in VMEM (no HBM round-trip).
    out_ref[...] = (jnp.dot(z.astype(jnp.bfloat16), w2_ref[...],
                            preferred_element_type=jnp.float32) + b2_ref[...])
    mean_ref[...] = mean
    std_ref[...] = std


def _linear_kernel(x_ref, w_ref, b_ref, o_ref):
    """latent2model applied to the cdt rows: o = x @ W + b."""
    o_ref[...] = (jnp.dot(x_ref[...].astype(jnp.bfloat16), w_ref[...],
                          preferred_element_type=jnp.float32) + b_ref[...])


# ----------------------------- wrappers ------------------------------------ #

def _resident(arr):
    """Full-array block that stays resident in VMEM for every grid step."""
    return pl.BlockSpec(arr.shape, lambda i: (0, 0))


def _call_vae_z(x2d, noise2d, w1m, w1v, b1m, b1v, w2, b2):
    M, d_model = x2d.shape
    d_latent = w1m.shape[1]
    tm = _row_tile(M)
    grid = (pl.cdiv(M, tm),)

    def rows(ncols):
        return pl.BlockSpec((tm, ncols), lambda i: (i, 0))

    flops = 2 * M * d_model * (2 * d_latent) + 2 * M * d_latent * d_model
    bytes_accessed = (4 * (x2d.size + noise2d.size)
                      + 2 * (w1m.size + w1v.size + w2.size)
                      + 4 * (b1m.size + b1v.size + b2.size)
                      + 4 * M * (2 * d_latent + d_model))

    return pl.pallas_call(
        _vae_z_kernel,
        out_shape=(
            jax.ShapeDtypeStruct((M, d_latent), jnp.float32),   # latent_mean
            jax.ShapeDtypeStruct((M, d_latent), jnp.float32),   # latent_std
            jax.ShapeDtypeStruct((M, d_model), jnp.float32),    # latent2model(z)
        ),
        grid=grid,
        in_specs=[
            rows(d_model),                 # x tile (pipelined)
            rows(d_latent),                # noise tile (pipelined)
            _resident(w1m), _resident(w1v),
            _resident(b1m), _resident(b1v),
            _resident(w2), _resident(b2),
        ],
        out_specs=(rows(d_latent), rows(d_latent), rows(d_model)),
        compiler_params=pltpu.CompilerParams(dimension_semantics=("parallel",)),
        cost_estimate=pl.CostEstimate(flops=flops,
                                      transcendentals=M * d_latent,
                                      bytes_accessed=bytes_accessed),
    )(x2d, noise2d, w1m, w1v, b1m, b1v, w2, b2)


def _call_cdt_linear(c2d, w2, b2):
    M, d_latent = c2d.shape
    d_model = w2.shape[1]
    tm = _row_tile(M)
    grid = (pl.cdiv(M, tm),)
    flops = 2 * M * d_latent * d_model
    bytes_accessed = 4 * c2d.size + 2 * w2.size + 4 * b2.size + 4 * M * d_model

    return pl.pallas_call(
        _linear_kernel,
        out_shape=jax.ShapeDtypeStruct((M, d_model), jnp.float32),
        grid=grid,
        in_specs=[pl.BlockSpec((tm, d_latent), lambda i: (i, 0)),
                  _resident(w2), _resident(b2)],
        out_specs=pl.BlockSpec((tm, d_model), lambda i: (i, 0)),
        compiler_params=pltpu.CompilerParams(dimension_semantics=("parallel",)),
        cost_estimate=pl.CostEstimate(flops=flops, transcendentals=0,
                                      bytes_accessed=bytes_accessed),
    )(c2d, w2, b2)


def vae_sample_forward(params, x, cdt, noise):
    """Forward pass of VAEsample (batch_first=True, seq_pos=1).

    x:     (B, S, d_model)
    cdt:   (B, S_c, d_latent)
    noise: (B, S, d_latent)  standard-normal sample
    returns (out, latent_mean, latent_std) with
      out:  (B, S + S_c, d_model), mean/std: (B, S, d_latent)
    """
    B, S, d_model = x.shape
    Sc = cdt.shape[1]
    d_latent = params["w2"].shape[0]

    # Split model2sample into mean / logvar halves outside the kernel (avoids an
    # in-vreg sub-(8,128) lane slice) and cast matmul weights to bf16 once.
    w1 = params["w1"]
    w1m = w1[:, :d_latent].astype(jnp.bfloat16)
    w1v = w1[:, d_latent:].astype(jnp.bfloat16)
    b1m = params["b1"][:, :d_latent]
    b1v = params["b1"][:, d_latent:]
    w2 = params["w2"].astype(jnp.bfloat16)
    b2 = params["b2"]

    mean2d, std2d, out_z2d = _call_vae_z(
        x.reshape(B * S, d_model), noise.reshape(B * S, d_latent),
        w1m, w1v, b1m, b1v, w2, b2)
    out_c2d = _call_cdt_linear(cdt.reshape(B * Sc, d_latent), w2, b2)

    # Only small, post-matmul, lane-dense outputs are concatenated (the seq_pos=1
    # concat of the module); the expensive z / cat HBM traffic is gone.
    out = jnp.concatenate(
        [out_z2d.reshape(B, S, d_model), out_c2d.reshape(B, Sc, d_model)], axis=1)
    return out, mean2d.reshape(B, S, d_latent), std2d.reshape(B, S, d_latent)


def init_params(key, d_model, d_latent):
    """Deterministic synthetic init; shapes mirror nn.Linear (stored transposed)."""
    k1, k2, k3, k4 = jax.random.split(key, 4)
    bound1 = 1.0 / (d_model ** 0.5)
    bound2 = 1.0 / (d_latent ** 0.5)
    return {
        "w1": jax.random.uniform(k1, (d_model, 2 * d_latent), jnp.float32, -bound1, bound1),
        "b1": jax.random.uniform(k2, (1, 2 * d_latent), jnp.float32, -bound1, bound1),
        "w2": jax.random.uniform(k3, (d_latent, d_model), jnp.float32, -bound2, bound2),
        "b2": jax.random.uniform(k4, (1, d_model), jnp.float32, -bound2, bound2),
    }


# ------------------------------- main --------------------------------------- #

if __name__ == "__main__":
    B, S, Sc = 2, 8, 4
    d_model, d_latent = 32, 16

    root = jax.random.PRNGKey(0)
    kp, kx, kc, kn = jax.random.split(root, 4)

    params = init_params(kp, d_model, d_latent)
    x = jax.random.normal(kx, (B, S, d_model), jnp.float32)
    cdt = jax.random.normal(kc, (B, Sc, d_latent), jnp.float32)
    # torch.normal(mean=0, std=1, size=latent_mean.size()) drawn once, passed in.
    noise = jax.random.normal(kn, (B, S, d_latent), jnp.float32)

    out, mean, std = jax.jit(vae_sample_forward)(params, x, cdt, noise)
    jax.block_until_ready((out, mean, std))

    # Pure-JAX reference using the same bf16-rounded weights the kernels see, so the
    # only tolerated drift is bf16 activation rounding on the MXU inputs.
    w1_r = params["w1"].astype(jnp.bfloat16).astype(jnp.float32)
    w2_r = params["w2"].astype(jnp.bfloat16).astype(jnp.float32)
    lin = x @ w1_r + params["b1"][0]
    mean_ref = lin[:, :, :d_latent]
    std_ref = jnp.exp(lin[:, :, d_latent:] / 2.0)
    z_ref = mean_ref + std_ref * noise
    out_ref = jnp.concatenate([z_ref, cdt], axis=1) @ w2_r + params["b2"][0]

    assert out.shape == (B, S + Sc, d_model)
    assert mean.shape == (B, S, d_latent) and std.shape == (B, S, d_latent)
    assert jnp.allclose(mean, mean_ref, atol=2e-2, rtol=2e-2)
    assert jnp.allclose(std, std_ref, atol=2e-2, rtol=2e-2)
    assert jnp.allclose(out, out_ref, atol=3e-2, rtol=3e-2)

    print("KERNEL_OK")
</pallas_src>

<mosaic_0001>
module attributes {stable_mosaic.version = 11 : i64} {
  func.func @_linear_kernel(%arg0: i32, %arg1: memref<8x16xf32, #tpu.memory_space<vmem>>, %arg2: memref<16x32xbf16, #tpu.memory_space<vmem>>, %arg3: memref<1x32xf32, #tpu.memory_space<vmem>>, %arg4: memref<8x32xf32, #tpu.memory_space<vmem>>) attributes {dimension_semantics = [#tpu.dimension_semantics<parallel>], iteration_bounds = array<i64: 1>, scalar_prefetch = 0 : i64, scratch_operands = 0 : i64, tpu.core_type = #tpu.core_type<tc>, window_params = [{transform_indices = @transform_0, window_bounds = array<i64: 8, 16>}, {pipeline_mode = #tpu.pipeline_mode<synchronous>, transform_indices = @transform_1, window_bounds = array<i64: 16, 32>}, {pipeline_mode = #tpu.pipeline_mode<synchronous>, transform_indices = @transform_2, window_bounds = array<i64: 1, 32>}, {transform_indices = @transform_3, window_bounds = array<i64: 8, 32>}]} {
    %c0 = arith.constant 0 : index
    %c0_0 = arith.constant 0 : index
    %0 = vector.load %arg1[%c0, %c0_0] : memref<8x16xf32, #tpu.memory_space<vmem>>, vector<8x16xf32>
    %1 = arith.truncf %0 : vector<8x16xf32> to vector<8x16xbf16>
    %c0_1 = arith.constant 0 : index
    %c0_2 = arith.constant 0 : index
    %2 = vector.load %arg2[%c0_1, %c0_2] : memref<16x32xbf16, #tpu.memory_space<vmem>>, vector<16x32xbf16>
    %cst = arith.constant dense<0.000000e+00> : vector<8x32xf32>
    %3 = tpu.matmul %1, %2, %cst {dimension_numbers = #tpu.dot_dimension_numbers<[1], [0], [0], [1], [0, 0, 1, 1], [], []>} : vector<8x16xbf16>, vector<16x32xbf16>, vector<8x32xf32> -> vector<8x32xf32>
    %c0_3 = arith.constant 0 : index
    %c0_4 = arith.constant 0 : index
    %4 = vector.load %arg3[%c0_3, %c0_4] : memref<1x32xf32, #tpu.memory_space<vmem>>, vector<1x32xf32>
    %5 = vector.broadcast %4 : vector<1x32xf32> to vector<8x32xf32>
    %6 = arith.addf %3, %5 : vector<8x32xf32>
    %c0_5 = arith.constant 0 : index
    %c0_6 = arith.constant 0 : index
    %7 = vector.load %arg4[%c0_5, %c0_6] : memref<8x32xf32, #tpu.memory_space<vmem>>, vector<8x32xf32>
    tpu.vector_store %arg4[%c0_5, %c0_6], %6 {strides = array<i32>} : memref<8x32xf32, #tpu.memory_space<vmem>>, vector<8x32xf32>,
    return
  }
  func.func @transform_0(%arg0: i32) -> (i32, i32) {
    %c0_i32 = arith.constant 0 : i32
    %c0_i32_0 = arith.constant 0 : i32
    return %arg0, %c0_i32 : i32, i32
  }
  func.func @transform_1(%arg0: i32) -> (i32, i32) {
    %c0_i32 = arith.constant 0 : i32
    %c0_i32_0 = arith.constant 0 : i32
    %c0_i32_1 = arith.constant 0 : i32
    return %c0_i32, %c0_i32_0 : i32, i32
  }
  func.func @transform_2(%arg0: i32) -> (i32, i32) {
    %c0_i32 = arith.constant 0 : i32
    %c0_i32_0 = arith.constant 0 : i32
    %c0_i32_1 = arith.constant 0 : i32
    return %c0_i32, %c0_i32_0 : i32, i32
  }
  func.func @transform_3(%arg0: i32) -> (i32, i32) {
    %c0_i32 = arith.constant 0 : i32
    %c0_i32_0 = arith.constant 0 : i32
    return %arg0, %c0_i32 : i32, i32
  }
}

module attributes {stable_mosaic.version = 11 : i64} {
  func.func @_vae_z_kernel(%arg0: i32, %arg1: memref<16x32xf32, #tpu.memory_space<vmem>>, %arg2: memref<16x16xf32, #tpu.memory_space<vmem>>, %arg3: memref<32x16xbf16, #tpu.memory_space<vmem>>, %arg4: memref<32x16xbf16, #tpu.memory_space<vmem>>, %arg5: memref<1x16xf32, #tpu.memory_space<vmem>>, %arg6: memref<1x16xf32, #tpu.memory_space<vmem>>, %arg7: memref<16x32xbf16, #tpu.memory_space<vmem>>, %arg8: memref<1x32xf32, #tpu.memory_space<vmem>>, %arg9: memref<16x16xf32, #tpu.memory_space<vmem>>, %arg10: memref<16x16xf32, #tpu.memory_space<vmem>>, %arg11: memref<16x32xf32, #tpu.memory_space<vmem>>) attributes {dimension_semantics = [#tpu.dimension_semantics<parallel>], iteration_bounds = array<i64: 1>, scalar_prefetch = 0 : i64, scratch_operands = 0 : i64, tpu.core_type = #tpu.core_type<tc>, window_params = [{transform_indices = @transform_0, window_bounds = array<i64: 16, 32>}, {transform_indices = @transform_1, window_bounds = array<i64: 16, 16>}, {pipeline_mode = #tpu.pipeline_mode<synchronous>, transform_indices = @transform_2, window_bounds = array<i64: 32, 16>}, {pipeline_mode = #tpu.pipeline_mode<synchronous>, transform_indices = @transform_3, window_bounds = array<i64: 32, 16>}, {pipeline_mode = #tpu.pipeline_mode<synchronous>, transform_indices = @transform_4, window_bounds = array<i64: 1, 16>}, {pipeline_mode = #tpu.pipeline_mode<synchronous>, transform_indices = @transform_5, window_bounds = array<i64: 1, 16>}, {pipeline_mode = #tpu.pipeline_mode<synchronous>, transform_indices = @transform_6, window_bounds = array<i64: 16, 32>}, {pipeline_mode = #tpu.pipeline_mode<synchronous>, transform_indices = @transform_7, window_bounds = array<i64: 1, 32>}, {transform_indices = @transform_8, window_bounds = array<i64: 16, 16>}, {transform_indices = @transform_9, window_bounds = array<i64: 16, 16>}, {transform_indices = @transform_10, window_bounds = array<i64: 16, 32>}]} {
    %c0 = arith.constant 0 : index
    %c0_0 = arith.constant 0 : index
    %0 = vector.load %arg1[%c0, %c0_0] : memref<16x32xf32, #tpu.memory_space<vmem>>, vector<16x32xf32>
    %1 = arith.truncf %0 : vector<16x32xf32> to vector<16x32xbf16>
    %c0_1 = arith.constant 0 : index
    %c0_2 = arith.constant 0 : index
    %2 = vector.load %arg3[%c0_1, %c0_2] : memref<32x16xbf16, #tpu.memory_space<vmem>>, vector<32x16xbf16>
    %cst = arith.constant dense<0.000000e+00> : vector<16x16xf32>
    %3 = tpu.matmul %1, %2, %cst {dimension_numbers = #tpu.dot_dimension_numbers<[1], [0], [0], [1], [0, 0, 1, 1], [], []>} : vector<16x32xbf16>, vector<32x16xbf16>, vector<16x16xf32> -> vector<16x16xf32>
    %c0_3 = arith.constant 0 : index
    %c0_4 = arith.constant 0 : index
    %4 = vector.load %arg5[%c0_3, %c0_4] : memref<1x16xf32, #tpu.memory_space<vmem>>, vector<1x16xf32>
    %5 = vector.broadcast %4 : vector<1x16xf32> to vector<16x16xf32>
    %6 = arith.addf %3, %5 : vector<16x16xf32>
    %c0_5 = arith.constant 0 : index
    %c0_6 = arith.constant 0 : index
    %7 = vector.load %arg4[%c0_5, %c0_6] : memref<32x16xbf16, #tpu.memory_space<vmem>>, vector<32x16xbf16>
    %cst_7 = arith.constant dense<0.000000e+00> : vector<16x16xf32>
    %8 = tpu.matmul %1, %7, %cst_7 {dimension_numbers = #tpu.dot_dimension_numbers<[1], [0], [0], [1], [0, 0, 1, 1], [], []>} : vector<16x32xbf16>, vector<32x16xbf16>, vector<16x16xf32> -> vector<16x16xf32>
    %c0_8 = arith.constant 0 : index
    %c0_9 = arith.constant 0 : index
    %9 = vector.load %arg6[%c0_8, %c0_9] : memref<1x16xf32, #tpu.memory_space<vmem>>, vector<1x16xf32>
    %10 = vector.broadcast %9 : vector<1x16xf32> to vector<16x16xf32>
    %11 = arith.addf %8, %10 : vector<16x16xf32>
    %cst_10 = arith.constant 5.000000e-01 : f32
    %12 = vector.broadcast %cst_10 : f32 to vector<16x16xf32>
    %13 = arith.mulf %11, %12 : vector<16x16xf32>
    %14 = math.exp %13 : vector<16x16xf32>
    %c0_11 = arith.constant 0 : index
    %c0_12 = arith.constant 0 : index
    %15 = vector.load %arg2[%c0_11, %c0_12] : memref<16x16xf32, #tpu.memory_space<vmem>>, vector<16x16xf32>
    %16 = arith.mulf %14, %15 : vector<16x16xf32>
    %17 = arith.addf %6, %16 : vector<16x16xf32>
    %18 = arith.truncf %17 : vector<16x16xf32> to vector<16x16xbf16>
    %c0_13 = arith.constant 0 : index
    %c0_14 = arith.constant 0 : index
    %19 = vector.load %arg7[%c0_13, %c0_14] : memref<16x32xbf16, #tpu.memory_space<vmem>>, vector<16x32xbf16>
    %cst_15 = arith.constant dense<0.000000e+00> : vector<16x32xf32>
    %20 = tpu.matmul %18, %19, %cst_15 {dimension_numbers = #tpu.dot_dimension_numbers<[1], [0], [0], [1], [0, 0, 1, 1], [], []>} : vector<16x16xbf16>, vector<16x32xbf16>, vector<16x32xf32> -> vector<16x32xf32>
    %c0_16 = arith.constant 0 : index
    %c0_17 = arith.constant 0 : index
    %21 = vector.load %arg8[%c0_16, %c0_17] : memref<1x32xf32, #tpu.memory_space<vmem>>, vector<1x32xf32>
    %22 = vector.broadcast %21 : vector<1x32xf32> to vector<16x32xf32>
    %23 = arith.addf %20, %22 : vector<16x32xf32>
    %c0_18 = arith.constant 0 : index
    %c0_19 = arith.constant 0 : index
    %24 = vector.load %arg11[%c0_18, %c0_19] : memref<16x32xf32, #tpu.memory_space<vmem>>, vector<16x32xf32>
    tpu.vector_store %arg11[%c0_18, %c0_19], %23 {strides = array<i32>} : memref<16x32xf32, #tpu.memory_space<vmem>>, vector<16x32xf32>,
    %c0_20 = arith.constant 0 : index
    %c0_21 = arith.constant 0 : index
    %25 = vector.load %arg9[%c0_20, %c0_21] : memref<16x16xf32, #tpu.memory_space<vmem>>, vector<16x16xf32>
    tpu.vector_store %arg9[%c0_20, %c0_21], %6 {strides = array<i32>} : memref<16x16xf32, #tpu.memory_space<vmem>>, vector<16x16xf32>,
    %c0_22 = arith.constant 0 : index
    %c0_23 = arith.constant 0 : index
    %26 = vector.load %arg10[%c0_22, %c0_23] : memref<16x16xf32, #tpu.memory_space<vmem>>, vector<16x16xf32>
    tpu.vector_store %arg10[%c0_22, %c0_23], %14 {strides = array<i32>} : memref<16x16xf32, #tpu.memory_space<vmem>>, vector<16x16xf32>,
    return
  }
  func.func @transform_0(%arg0: i32) -> (i32, i32) {
    %c0_i32 = arith.constant 0 : i32
    %c0_i32_0 = arith.constant 0 : i32
    return %arg0, %c0_i32 : i32, i32
  }
  func.func @transform_1(%arg0: i32) -> (i32, i32) {
    %c0_i32 = arith.constant 0 : i32
    %c0_i32_0 = arith.constant 0 : i32
    return %arg0, %c0_i32 : i32, i32
  }
  func.func @transform_2(%arg0: i32) -> (i32, i32) {
    %c0_i32 = arith.constant 0 : i32
    %c0_i32_0 = arith.constant 0 : i32
    %c0_i32_1 = arith.constant 0 : i32
    return %c0_i32, %c0_i32_0 : i32, i32
  }
  func.func @transform_3(%arg0: i32) -> (i32, i32) {
    %c0_i32 = arith.constant 0 : i32
    %c0_i32_0 = arith.constant 0 : i32
    %c0_i32_1 = arith.constant 0 : i32
    return %c0_i32, %c0_i32_0 : i32, i32
  }
  func.func @transform_4(%arg0: i32) -> (i32, i32) {
    %c0_i32 = arith.constant 0 : i32
    %c0_i32_0 = arith.constant 0 : i32
    %c0_i32_1 = arith.constant 0 : i32
    return %c0_i32, %c0_i32_0 : i32, i32
  }
  func.func @transform_5(%arg0: i32) -> (i32, i32) {
    %c0_i32 = arith.constant 0 : i32
    %c0_i32_0 = arith.constant 0 : i32
    %c0_i32_1 = arith.constant 0 : i32
    return %c0_i32, %c0_i32_0 : i32, i32
  }
  func.func @transform_6(%arg0: i32) -> (i32, i32) {
    %c0_i32 = arith.constant 0 : i32
    %c0_i32_0 = arith.constant 0 : i32
    %c0_i32_1 = arith.constant 0 : i32
    return %c0_i32, %c0_i32_0 : i32, i32
  }
  func.func @transform_7(%arg0: i32) -> (i32, i32) {
    %c0_i32 = arith.constant 0 : i32
    %c0_i32_0 = arith.constant 0 : i32
    %c0_i32_1 = arith.constant 0 : i32
    return %c0_i32, %c0_i32_0 : i32, i32
  }
  func.func @transform_8(%arg0: i32) -> (i32, i32) {
    %c0_i32 = arith.constant 0 : i32
    %c0_i32_0 = arith.constant 0 : i32
    return %arg0, %c0_i32 : i32, i32
  }
  func.func @transform_9(%arg0: i32) -> (i32, i32) {
    %c0_i32 = arith.constant 0 : i32
    %c0_i32_0 = arith.constant 0 : i32
    return %arg0, %c0_i32 : i32, i32
  }
  func.func @transform_10(%arg0: i32) -> (i32, i32) {
    %c0_i32 = arith.constant 0 : i32
    %c0_i32_0 = arith.constant 0 : i32
    return %arg0, %c0_i32 : i32, i32
  }
}

</mosaic_0001>

<llo_original>
// kernel: vae_sample_forward.3
$region0: #{vae_sample_forward.3}
  #allocation0 [shape = 'u32[]', space=smem, size = 0x4, offset = 0x4, fixed_abs, tag = 'smem constant byte address 0x4 - core index']
  #allocation1 [shape = 'u32[72,128]{1,0:T(1,128)}', space=vmem, size = 0x9000, scoped, tag = 'internal scratch']
  %s0 = inlined_call_operand.vmem [shape: f32[8,16], index: 0, kind: input, shape index: {}]
  %s1 = inlined_call_operand.vmem [shape: bf16[16,32], index: 1, kind: input, shape index: {}]
  %s2 = inlined_call_operand.vmem [shape: f32[1,32], index: 2, kind: input, shape index: {}]
  %s3 = inlined_call_operand.vmem [shape: f32[8,32], index: 3, kind: output, shape index: {}]
  %s4 = sld [smem:[#allocation0]]
  $region22: #{vae_sample_forward.3} parent=0
    _
  %s6 = ssub.s32 1, %s4
  %s7 = scalar_select 0, %s6, %s4
  // Predicated region
  $region2: #{vae_sample_forward.3} parent=0 // pred_check
    _
  $region3: #{vae_sample_forward.3} parent=0 // pred_check_branch
    %9 = sbr.rel (0) target = $region5
  $region4: #{vae_sample_forward.3} parent=0 // pred_region
    _
  $region5: #{vae_sample_forward.3} parent=0 // pred_fallthru
    _
  // Predicated region
  $region6: #{vae_sample_forward.3} parent=0 // pred_check
    _
  $region7: #{vae_sample_forward.3} parent=0 // pred_check_branch
    %11 = sbr.rel (0) target = $region9
  $region8: #{vae_sample_forward.3} parent=0 // pred_region
    _
  $region9: #{vae_sample_forward.3} parent=0 // pred_fallthru
    _
  // Predicated region
  $region10: #{vae_sample_forward.3} parent=0 // pred_check
    _
  $region11: #{vae_sample_forward.3} parent=0 // pred_check_branch
    %13 = sbr.rel (0) target = $region13
  $region12: #{vae_sample_forward.3} parent=0 // pred_region
    _
  $region13: #{vae_sample_forward.3} parent=0 // pred_fallthru
    _
  %v15 = vld [vmem:[%s0] sm:$0xff]
  %v16 = vpack.c.bf16 %v15, %v15
  %v17 = vld [vmem:[%s1] sm:$0xf]
  %v18 = vld [vmem:[%s1 + $0x4] sm:$0xf]
  %v19 = vld [vmem:[%s2] sm:$0x1]
  %v21 = vperm.slane %v19, 0
  %v25 = vunpack.c.l.b16 %v17
  %v26 = vunpack.c.l.b16 %v18
  %v27 = vpack.c.b16 %v26, %v25
  %vm29 = vcmask 130048
  %v31 = vsel %vm29, %v16, 0
  %33 = vmatpush.bf16.msra.mxu0 0
  %34 = vmatpush.bf16.msra.mxu0 0
  %35 = vmatpush.bf16.msra.mxu0 0
  %36 = vmatpush.bf16.msra.mxu0 0
  %37 = vmatpush.bf16.msra.mxu0 0
  %38 = vmatpush.bf16.msra.mxu0 0
  %39 = vmatpush.bf16.msra.mxu0 0
  %40 = vmatpush.bf16.msra.mxu0 %v27
  %41 = vmatmul.bf16.gmra.mxu0 %v31
  %v42 = vpop.f32.mrf.mxu0
  %v43 = vadd.f32 %v21, %v42
  %v44 = vpop.f32.mrf.mxu0
  %45 = vdwg.mxu0
  %vm46 = vcmask 261120
  %47 = vst.msk [vmem:[%s3] sm:$0xff] %vm46, %v43
  // Predicated region
  $region14: #{vae_sample_forward.3} parent=0 // pred_check
    _
  $region15: #{vae_sample_forward.3} parent=0 // pred_check_branch
    %49 = sbr.rel (0) target = $region17
  $region16: #{vae_sample_forward.3} parent=0 // pred_region
    _
  $region17: #{vae_sample_forward.3} parent=0 // pred_fallthru
    _
  // Predicated region
  $region18: #{vae_sample_forward.3} parent=0 // pred_check
    _
  $region19: #{vae_sample_forward.3} parent=0 // pred_check_branch
    %51 = sbr.rel (0) target = $region21
  $region20: #{vae_sample_forward.3} parent=0 // pred_region
    _
  $region21: #{vae_sample_forward.3} parent=0 // pred_fallthru
    _

// kernel: vae_sample_forward.2
$region0: #{vae_sample_forward.2}
  #allocation0 [shape = 'u32[]', space=smem, size = 0x4, offset = 0x4, fixed_abs, tag = 'smem constant byte address 0x4 - core index']
  #allocation1 [shape = 'u32[72,128]{1,0:T(1,128)}', space=vmem, size = 0x9000, scoped, tag = 'internal scratch']
  %s0 = inlined_call_operand.vmem [shape: f32[16,32], index: 0, kind: input, shape index: {}]
  %s1 = inlined_call_operand.vmem [shape: f32[16,16], index: 1, kind: input, shape index: {}]
  %s2 = inlined_call_operand.vmem [shape: bf16[32,16], index: 2, kind: input, shape index: {}]
  %s3 = inlined_call_operand.vmem [shape: bf16[32,16], index: 3, kind: input, shape index: {}]
  %s4 = inlined_call_operand.vmem [shape: f32[1,16], index: 4, kind: input, shape index: {}]
  %s5 = inlined_call_operand.vmem [shape: f32[1,16], index: 5, kind: input, shape index: {}]
  %s6 = inlined_call_operand.vmem [shape: bf16[16,32], index: 6, kind: input, shape index: {}]
  %s7 = inlined_call_operand.vmem [shape: f32[1,32], index: 7, kind: input, shape index: {}]
  %s8 = inlined_call_operand.hbm [shape: f32[16,16], index: 8, kind: output, shape index: {0}]
  %s9 = inlined_call_operand.hbm [shape: f32[16,16], index: 9, kind: output, shape index: {1}]
  %s10 = inlined_call_operand.vmem [shape: f32[16,32], index: 10, kind: output, shape index: {2}]
  %11 = xla_tuple %s8, %s9, %s10
  %s12 = sld [smem:[#allocation0]]
  $region58: #{vae_sample_forward.2} parent=0
    _
  %s14 = ssub.s32 1, %s12
  %s15 = scalar_select 0, %s14, %s12
  $region1: #{vae_sample_forward.2} parent=0
    #allocation2 [shape = 'u8[8192]{0}', space=vmem, size = 0x2000, scoped, tag = 'output window, operand 0, single buffered']
    #allocation3 [shape = 's32[1]{0}', space=sflag, size = 0x4, scoped, tag = 'scoped memory for vae_sample_forward.2']
    #allocation4 [shape = 'u8[8192]{0}', space=vmem, size = 0x2000, scoped, tag = 'output window, operand 1, single buffered']
    #allocation5 [shape = 's32[1]{0}', space=sflag, size = 0x4, scoped, tag = 'scoped memory for vae_sample_forward.2']
    %16 = vsyncpa [#allocation3], 0
    %17 = vsyncpa [#allocation5], 0
    // Predicated region
    $region2: #{vae_sample_forward.2} parent=1 // pred_check
      _
    $region3: #{vae_sample_forward.2} parent=1 // pred_check_branch
      %19 = sbr.rel (0) target = $region5
    $region4: #{vae_sample_forward.2} parent=1 // pred_region
      _
    $region5: #{vae_sample_forward.2} parent=1 // pred_fallthru
      _
    // Predicated region
    $region6: #{vae_sample_forward.2} parent=1 // pred_check
      _
    $region7: #{vae_sample_forward.2} parent=1 // pred_check_branch
      %21 = sbr.rel (0) target = $region9
    $region8: #{vae_sample_forward.2} parent=1 // pred_region
      _
    $region9: #{vae_sample_forward.2} parent=1 // pred_fallthru
      _
    // Predicated region
    $region10: #{vae_sample_forward.2} parent=1 // pred_check
      _
    $region11: #{vae_sample_forward.2} parent=1 // pred_check_branch
      %23 = sbr.rel (0) target = $region13
    $region12: #{vae_sample_forward.2} parent=1 // pred_region
      _
    $region13: #{vae_sample_forward.2} parent=1 // pred_fallthru
      _
    // Predicated region
    $region14: #{vae_sample_forward.2} parent=1 // pred_check
      _
    $region15: #{vae_sample_forward.2} parent=1 // pred_check_branch
      %25 = sbr.rel (0) target = $region17
    $region16: #{vae_sample_forward.2} parent=1 // pred_region
      _
    $region17: #{vae_sample_forward.2} parent=1 // pred_fallthru
      _
    // Predicated region
    $region18: #{vae_sample_forward.2} parent=1 // pred_check
      _
    $region19: #{vae_sample_forward.2} parent=1 // pred_check_branch
      %27 = sbr.rel (0) target = $region21
    $region20: #{vae_sample_forward.2} parent=1 // pred_region
      _
    $region21: #{vae_sample_forward.2} parent=1 // pred_fallthru
      _
    // Predicated region
    $region22: #{vae_sample_forward.2} parent=1 // pred_check
      _
    $region23: #{vae_sample_forward.2} parent=1 // pred_check_branch
      %29 = sbr.rel (0) target = $region25
    $region24: #{vae_sample_forward.2} parent=1 // pred_region
      _
    $region25: #{vae_sample_forward.2} parent=1 // pred_fallthru
      _
    // Predicated region
    $region26: #{vae_sample_forward.2} parent=1 // pred_check
      _
    $region27: #{vae_sample_forward.2} parent=1 // pred_check_branch
      %31 = sbr.rel (0) target = $region29
    $region28: #{vae_sample_forward.2} parent=1 // pred_region
      _
    $region29: #{vae_sample_forward.2} parent=1 // pred_fallthru
      _
    // Predicated region
    $region30: #{vae_sample_forward.2} parent=1 // pred_check
      _
    $region31: #{vae_sample_forward.2} parent=1 // pred_check_branch
      %33 = sbr.rel (0) target = $region33
    $region32: #{vae_sample_forward.2} parent=1 // pred_region
      _
    $region33: #{vae_sample_forward.2} parent=1 // pred_fallthru
      _
    %v35 = vld [vmem:[%s0] sm:$0xff]
    %v36 = vld [vmem:[%s0 + $0x8] sm:$0xff]
    %v37 = vpack.c.bf16 %v36, %v35
    %v38 = vld [vmem:[%s2] sm:$0xf]
    %v39 = vld [vmem:[%s2 + $0x4] sm:$0xf]
    %v40 = vld [vmem:[%s2 + $0x8] sm:$0xf]
    %v41 = vld [vmem:[%s2 + $0xc] sm:$0xf]
    %v42 = vld [vmem:[%s4] sm:$0x1]
    %v44 = vperm.slane %v42, 0
    %v50 = vunpack.c.l.b16 %v38
    %v51 = vunpack.c.l.b16 %v39
    %v52 = vunpack.c.l.b16 %v40
    %v53 = vunpack.c.l.b16 %v41
    %v54 = vpack.c.b16 %v51, %v50
    %v55 = vpack.c.b16 %v53, %v52
    %vm58 = vcmask 261120
    %v60 = vsel %vm58, %v37, 0
    %62 = vmatpush.bf16.msra.mxu0 0
    %63 = vmatpush.bf16.msra.mxu0 0
    %64 = vmatpush.bf16.msra.mxu0 0
    %65 = vmatpush.bf16.msra.mxu0 0
    %66 = vmatpush.bf16.msra.mxu0 0
    %67 = vmatpush.bf16.msra.mxu0 0
    %68 = vmatpush.bf16.msra.mxu0 %v55
    %69 = vmatpush.bf16.msra.mxu0 %v54
    %70 = vmatmul.bf16.gmra.mxu0 %v60
    %v71 = vpop.f32.mrf.mxu0
    %v72 = vadd.f32 %v44, %v71
    %v73 = vpop.f32.mrf.mxu0
    %v74 = vadd.f32 %v44, %v73
    %75 = vdwg.mxu0
    %v76 = vld [vmem:[%s3] sm:$0xf]
    %v77 = vld [vmem:[%s3 + $0x4] sm:$0xf]
    %v78 = vld [vmem:[%s3 + $0x8] sm:$0xf]
    %v79 = vld [vmem:[%s3 + $0xc] sm:$0xf]
    %v80 = vld [vmem:[%s5] sm:$0x1]
    %v82 = vperm.slane %v80, 0
    %v88 = vunpack.c.l.b16 %v76
    %v89 = vunpack.c.l.b16 %v77
    %v90 = vunpack.c.l.b16 %v78
    %v91 = vunpack.c.l.b16 %v79
    %v92 = vpack.c.b16 %v89, %v88
    %v93 = vpack.c.b16 %v91, %v90
    %96 = vmatpush.bf16.msra.mxu0 0
    %97 = vmatpush.bf16.msra.mxu0 0
    %98 = vmatpush.bf16.msra.mxu0 0
    %99 = vmatpush.bf16.msra.mxu0 0
    %100 = vmatpush.bf16.msra.mxu0 0
    %101 = vmatpush.bf16.msra.mxu0 0
    %102 = vmatpush.bf16.msra.mxu0 %v93
    %103 = vmatpush.bf16.msra.mxu0 %v92
    %104 = vmatmul.bf16.gmra.mxu0 %v60
    %v105 = vpop.f32.mrf.mxu0
    %v106 = vadd.f32 %v82, %v105
    %v107 = vpop.f32.mrf.mxu0
    %v108 = vadd.f32 %v82, %v107
    %109 = vdwg.mxu0
    %v110 = vmul.f32 %v106, 0.5
    %v111 = vmul.f32 %v108, 0.5
    %v112 = vmul.f32 %v110, 1.442695
    %v113 = vpow.pop %v112
    %v114 = vmul.f32 %v111, 1.442695
    %v115 = vpow.pop %v114
    %v116 = vld [vmem:[%s1] sm:$0xff]
    %v117 = vld [vmem:[%s1 + $0x8] sm:$0xff]
    %v118 = vmul.f32 %v113, %v116
    %v119 = vmul.f32 %v115, %v117
    %v120 = vadd.f32 %v72, %v118
    %v121 = vadd.f32 %v74, %v119
    %v122 = vpack.c.bf16 %v121, %v120
    %v123 = vld [vmem:[%s6] sm:$0xf]
    %v124 = vld [vmem:[%s6 + $0x4] sm:$0xf]
    %v125 = vld [vmem:[%s7] sm:$0x1]
    %v127 = vperm.slane %v125, 0
    %v131 = vunpack.c.l.b16 %v123
    %v132 = vunpack.c.l.b16 %v124
    %v133 = vpack.c.b16 %v132, %v131
    %vm135 = vcmask 130048
    %v137 = vsel %vm135, %v122, 0
    %139 = vmatpush.bf16.msra.mxu0 0
    %140 = vmatpush.bf16.msra.mxu0 0
    %141 = vmatpush.bf16.msra.mxu0 0
    %142 = vmatpush.bf16.msra.mxu0 0
    %143 = vmatpush.bf16.msra.mxu0 0
    %144 = vmatpush.bf16.msra.mxu0 0
    %145 = vmatpush.bf16.msra.mxu0 0
    %146 = vmatpush.bf16.msra.mxu0 %v133
    %147 = vmatmul.bf16.gmra.mxu0 %v137
    %v148 = vpop.f32.mrf.mxu0
    %v149 = vadd.f32 %v127, %v148
    %v150 = vpop.f32.mrf.mxu0
    %v151 = vadd.f32 %v127, %v150
    %152 = vdwg.mxu0
    %153 = vst.msk [vmem:[%s10] sm:$0xff] %vm58, %v149
    %154 = vst.msk [vmem:[%s10 + $0x8] sm:$0xff] %vm58, %v151
    %155 = vst.msk [vmem:[#allocation2] sm:$0xff] %vm135, %v72
    %156 = vst.msk [vmem:[#allocation2 + $0x8] sm:$0xff] %vm135, %v74
    %157 = vst.msk [vmem:[#allocation4] sm:$0xff] %vm135, %v113
    %158 = vst.msk [vmem:[#allocation4 + $0x8] sm:$0xff] %vm135, %v115
    // Predicated region
    $region34: #{vae_sample_forward.2} parent=1 // pred_check
      _
    $region35: #{vae_sample_forward.2} parent=1 // pred_check_branch
      %160 = sbr.rel (0) target = $region37
    $region36: #{vae_sample_forward.2} parent=1 // pred_region
      %162 = vsyncadd [#allocation3], 0
      %s163 = sshll.u32 [#allocation2], 4
      %s164 = int_to_ptr.vmem [resolvable:$true] %s163
      %s165 = sshll.u32 %s8, 4
      %s166 = int_to_ptr.hbm [resolvable:$true] %s165
      %171 = dma.vmem_to_hbm [thread:$0]  %s164, 256, %s166, [#allocation3], 128, 128, 8
    $region37: #{vae_sample_forward.2} parent=1 // pred_fallthru
      _
    // Predicated region
    $region38: #{vae_sample_forward.2} parent=1 // pred_check
      _
    $region39: #{vae_sample_forward.2} parent=1 // pred_check_branch
      %173 = sbr.rel (0) target = $region41
    $region40: #{vae_sample_forward.2} parent=1 // pred_region
      %175 = vsyncadd [#allocation5], 0
      %s176 = sshll.u32 [#allocation4], 4
      %s177 = int_to_ptr.vmem [resolvable:$true] %s176
      %s178 = sshll.u32 %s9, 4
      %s179 = int_to_ptr.hbm [resolvable:$true] %s178
      %184 = dma.vmem_to_hbm [thread:$0]  %s177, 256, %s179, [#allocation5], 128, 128, 8
    $region41: #{vae_sample_forward.2} parent=1 // pred_fallthru
      _
    // Predicated region
    $region42: #{vae_sample_forward.2} parent=1 // pred_check
      _
    $region43: #{vae_sample_forward.2} parent=1 // pred_check_branch
      %186 = sbr.rel (0) target = $region45
    $region44: #{vae_sample_forward.2} parent=1 // pred_region
      _
    $region45: #{vae_sample_forward.2} parent=1 // pred_fallthru
      _
    // Predicated region
    $region46: #{vae_sample_forward.2} parent=1 // pred_check
      _
    $region47: #{vae_sample_forward.2} parent=1 // pred_check_branch
      %188 = sbr.rel (0) target = $region49
    $region48: #{vae_sample_forward.2} parent=1 // pred_region
      %190 = dma.done [#allocation3], 256
    $region49: #{vae_sample_forward.2} parent=1 // pred_fallthru
      _
    // Predicated region
    $region50: #{vae_sample_forward.2} parent=1 // pred_check
      _
    $region51: #{vae_sample_forward.2} parent=1 // pred_check_branch
      %192 = sbr.rel (0) target = $region53
    $region52: #{vae_sample_forward.2} parent=1 // pred_region
      %194 = dma.done [#allocation5], 256
    $region53: #{vae_sample_forward.2} parent=1 // pred_fallthru
      _
    // Predicated region
    $region54: #{vae_sample_forward.2} parent=1 // pred_check
      _
    $region55: #{vae_sample_forward.2} parent=1 // pred_check_branch
      %196 = sbr.rel (0) target = $region57
    $region56: #{vae_sample_forward.2} parent=1 // pred_region
      _
    $region57: #{vae_sample_forward.2} parent=1 // pred_fallthru
      _
    %197 = vsyncpa [#allocation3], 1
    %198 = vsyncpa [#allocation5], 1

</llo_original>
